<compile_context>
chip_gen: v5e
topology: v5e:2x2
jax: 0.10.0
libtpu: 0.0.40
codegen_flags: <defaults>
</compile_context>

<pallas_src>
import functools

import jax
import jax.numpy as jnp
from jax.experimental import pallas as pl
from jax.experimental.pallas import tpu as pltpu

LANES = 128
SUBLANES = 8
NUM_SPLITS = 2          # leading "parallel" grid axis; shards across TCs on v7x
CHUNK_ROWS = 1024       # in-kernel chunk rows (bounds elementwise temporaries)
MAX_BLOCK_ROWS = 8192   # DMA block = (8192, 128); f32 -> 4 MiB per input block


def _round_down(a, b):
    return (a // b) * b


def _accumulate(x_ref, t_ref, inter_ref, sum_ref, chunk_rows, num_chunks,
                valid_rows=None):
    """Accumulate sum(x*t) and sum(x+t) of this block into (8,128) partials."""

    def one_chunk(xc, tc, row0):
        if valid_rows is not None:
            rid = row0 + jax.lax.broadcasted_iota(jnp.int32, xc.shape, 0)
            keep = rid < valid_rows
            xc = jnp.where(keep, xc, jnp.zeros_like(xc))
            tc = jnp.where(keep, tc, jnp.zeros_like(tc))
        xf = xc.astype(jnp.float32)
        tf = tc.astype(jnp.float32)
        # Whole-vreg tree adds: reshape groups full (8,128) vregs, so the
        # axis-0 reduction stays pure VPU (no cross-lane/sublane traffic).
        inter_ref[...] += jnp.sum((xf * tf).reshape(-1, SUBLANES, LANES), axis=0)
        sum_ref[...] += jnp.sum((xf + tf).reshape(-1, SUBLANES, LANES), axis=0)

    if num_chunks == 1:
        one_chunk(x_ref[...], t_ref[...], 0)
    else:
        @pl.loop(0, num_chunks)
        def _(j):
            r0 = pl.multiple_of(j * chunk_rows, chunk_rows)
            one_chunk(x_ref[pl.ds(r0, chunk_rows), :],
                      t_ref[pl.ds(r0, chunk_rows), :], r0)


def _dice_partial_kernel(x_ref, t_ref, inter_ref, sum_ref, *,
                         rows, block_rows, chunk_rows, tiles_per_split, ragged):
    i = pl.program_id(1)  # reduction ("arbitrary") axis

    @pl.when(i == 0)
    def _init():
        inter_ref[...] = jnp.zeros_like(inter_ref)
        sum_ref[...] = jnp.zeros_like(sum_ref)

    num_chunks = block_rows // chunk_rows

    if not ragged:
        # Grid divides evenly: no mask code emitted at all.
        _accumulate(x_ref, t_ref, inter_ref, sum_ref, chunk_rows, num_chunks)
    else:
        # Logical (unclamped) global tile index. Tiles past the end (odd tile
        # count split 2 ways) have valid_rows <= 0 and contribute nothing; the
        # last real tile is partially masked.
        g = pl.program_id(0) * tiles_per_split + i
        needs_mask = (g + 1) * block_rows > rows

        @pl.when(jnp.logical_not(needs_mask))
        def _fast():
            _accumulate(x_ref, t_ref, inter_ref, sum_ref, chunk_rows, num_chunks)

        @pl.when(needs_mask)
        def _masked():
            _accumulate(x_ref, t_ref, inter_ref, sum_ref, chunk_rows, num_chunks,
                        valid_rows=rows - g * block_rows)


def _dice_partials(x2, t2, max_block_rows, chunk_rows):
    rows = x2.shape[0]
    assert rows >= SUBLANES
    assert max_block_rows % SUBLANES == 0 and chunk_rows % SUBLANES == 0

    # chunk | block_rows, block_rows <= rows, all multiples of 8.
    chunk = min(chunk_rows, max_block_rows, _round_down(rows, SUBLANES))
    block_rows = min(_round_down(max_block_rows, chunk), _round_down(rows, chunk))
    n_tiles = pl.cdiv(rows, block_rows)
    num_splits = NUM_SPLITS if n_tiles >= NUM_SPLITS else 1
    tiles_per_split = pl.cdiv(n_tiles, num_splits)
    ragged = (rows % block_rows != 0) or (n_tiles != num_splits * tiles_per_split)

    def in_index_map(c, i):
        # Clamp so replicated tiles stay in bounds; their contribution is
        # zeroed by the in-kernel mask.
        return (jnp.minimum(c * tiles_per_split + i, n_tiles - 1), 0)

    kernel = functools.partial(
        _dice_partial_kernel, rows=rows, block_rows=block_rows, chunk_rows=chunk,
        tiles_per_split=tiles_per_split, ragged=ragged)

    in_block_bytes = block_rows * LANES * (x2.dtype.itemsize + t2.dtype.itemsize)
    # 2 double-buffered input streams + headroom for in-kernel temporaries.
    vmem_limit = int(2 * in_block_bytes + (16 << 20))

    cost = pl.CostEstimate(
        flops=5 * rows * LANES,
        transcendentals=0,
        bytes_accessed=int(x2.size * x2.dtype.itemsize
                           + t2.size * t2.dtype.itemsize
                           + 2 * num_splits * SUBLANES * LANES * 4))

    part_shape = jax.ShapeDtypeStruct((num_splits * SUBLANES, LANES), jnp.float32)
    part_spec = pl.BlockSpec((SUBLANES, LANES), lambda c, i: (c, 0))

    return pl.pallas_call(
        kernel,
        out_shape=(part_shape, part_shape),
        grid_spec=pltpu.PrefetchScalarGridSpec(
            num_scalar_prefetch=0,
            grid=(num_splits, tiles_per_split),
            in_specs=[pl.BlockSpec((block_rows, LANES), in_index_map),
                      pl.BlockSpec((block_rows, LANES), in_index_map)],
            out_specs=(part_spec, part_spec),
        ),
        compiler_params=pltpu.CompilerParams(
            dimension_semantics=("parallel", "arbitrary"),
            vmem_limit_bytes=vmem_limit,
        ),
        cost_estimate=cost,
    )(x2, t2)


def dice_loss(inputs, targets, smooth=1.0, *,
              max_block_rows=MAX_BLOCK_ROWS, chunk_rows=CHUNK_ROWS):
    """Pallas TPU implementation of DiceLoss.forward."""
    smooth = jnp.float32(smooth)

    x = inputs.reshape(-1)
    t = targets.reshape(-1)
    assert x.shape == t.shape
    # Keep float inputs in their HBM dtype; cast int/bool masks to bf16
    # (exact for 0/1 values) so the target stream is 2 B/elem, not 4.
    if not jnp.issubdtype(x.dtype, jnp.floating):
        x = x.astype(jnp.bfloat16)
    if not jnp.issubdtype(t.dtype, jnp.floating):
        t = t.astype(jnp.bfloat16)

    n = x.shape[0]
    rows = n // LANES
    if rows < SUBLANES:   # tiny input: handle everything in plain JAX
        rows = 0
    n_main = rows * LANES

    inter = jnp.float32(0.0)
    total = jnp.float32(0.0)

    # Sub-128-element tail (and sub-8-row inputs) reduced in plain JAX; avoids
    # padding/copying the whole flattened array.
    if n_main < n:
        xt = x[n_main:].astype(jnp.float32)
        tt = t[n_main:].astype(jnp.float32)
        inter = inter + jnp.sum(xt * tt)
        total = total + jnp.sum(xt) + jnp.sum(tt)

    if rows > 0:
        x2 = x[:n_main].reshape(rows, LANES)
        t2 = t[:n_main].reshape(rows, LANES)
        p_inter, p_sum = _dice_partials(x2, t2, max_block_rows, chunk_rows)
        inter = inter + jnp.sum(p_inter)
        total = total + jnp.sum(p_sum)

    dice = (2.0 * inter + smooth) / (total + smooth)
    return 1.0 - dice


def _reference(inputs, targets, smooth=1.0):
    xi = inputs.reshape(-1).astype(jnp.float32)
    ti = targets.reshape(-1).astype(jnp.float32)
    inter = jnp.sum(xi * ti)
    return 1.0 - (2.0 * inter + smooth) / (jnp.sum(xi) + jnp.sum(ti) + smooth)


if __name__ == "__main__":
    key = jax.random.PRNGKey(0)
    k1, k2, k3, k4, k5, k6 = jax.random.split(key, 6)

    # Segmentation probabilities + binary masks, NCHW [2, 4, 16, 16].
    inputs = jax.nn.sigmoid(jax.random.normal(k1, (2, 4, 16, 16), dtype=jnp.float32))
    targets = (jax.random.uniform(k2, (2, 4, 16, 16)) > 0.5).astype(jnp.float32)
    ref = _reference(inputs, targets, smooth=1.0)

    # 1) Default config: single tile, single chunk, no mask code.
    loss = dice_loss(inputs, targets, smooth=1)
    jax.block_until_ready(loss)
    assert jnp.allclose(loss, ref, atol=1e-5, rtol=1e-5), (loss, ref)

    # 2) Multi-tile + 2-way "parallel" split, evenly divisible (fast path only).
    loss2 = dice_loss(inputs, targets, smooth=1, max_block_rows=8, chunk_rows=8)
    jax.block_until_ready(loss2)
    assert jnp.allclose(loss2, ref, atol=1e-5, rtol=1e-5), (loss2, ref)

    # 3) Ragged last tile + lane tail + bool-mask (bf16) path:
    #    3*5*91 = 1365 elements -> 10 rows in kernel + 85-element JAX tail.
    inputs3 = jax.nn.sigmoid(jax.random.normal(k3, (3, 5, 91), dtype=jnp.float32))
    targets3 = jax.random.uniform(k4, (3, 5, 91)) > 0.5          # bool mask
    ref3 = _reference(inputs3, targets3.astype(jnp.float32), smooth=1.0)
    loss3 = dice_loss(inputs3, targets3, smooth=1, max_block_rows=8, chunk_rows=8)
    jax.block_until_ready(loss3)
    assert jnp.allclose(loss3, ref3, atol=1e-5, rtol=1e-5), (loss3, ref3)

    # 4) Multi-chunk inner loop + odd tile count (replicated tile fully masked)
    #    + ragged last tile + lane tail, bf16 inputs: 5*8*130 = 5200 elements.
    inputs4 = jax.nn.sigmoid(jax.random.normal(k5, (5, 8, 130))).astype(jnp.bfloat16)
    targets4 = (jax.random.uniform(k6, (5, 8, 130)) > 0.5).astype(jnp.bfloat16)
    ref4 = _reference(inputs4, targets4, smooth=1.0)
    loss4 = dice_loss(inputs4, targets4, smooth=1, max_block_rows=16, chunk_rows=8)
    jax.block_until_ready(loss4)
    assert jnp.allclose(loss4, ref4, atol=1e-4, rtol=1e-4), (loss4, ref4)

    print("KERNEL_OK")
</pallas_src>

<mosaic_0001>
module attributes {stable_mosaic.version = 11 : i64} {
  func.func @_dice_partial_kernel(%arg0: i32, %arg1: i32, %arg2: memref<16x128xf32, #tpu.memory_space<vmem>>, %arg3: memref<16x128xf32, #tpu.memory_space<vmem>>, %arg4: memref<8x128xf32, #tpu.memory_space<vmem>>, %arg5: memref<8x128xf32, #tpu.memory_space<vmem>>) attributes {dimension_semantics = [#tpu.dimension_semantics<parallel>, #tpu.dimension_semantics<arbitrary>], iteration_bounds = array<i64: 1, 1>, scalar_prefetch = 0 : i64, scratch_operands = 0 : i64, tpu.core_type = #tpu.core_type<tc>, window_params = [{transform_indices = @transform_0, window_bounds = array<i64: 16, 128>}, {transform_indices = @transform_1, window_bounds = array<i64: 16, 128>}, {transform_indices = @transform_2, window_bounds = array<i64: 8, 128>}, {transform_indices = @transform_3, window_bounds = array<i64: 8, 128>}]} {
    %c0_i32 = arith.constant 0 : i32
    %0 = arith.cmpi eq, %arg1, %c0_i32 : i32
    %1 = arith.extui %0 : i1 to i32
    %c0_i32_0 = arith.constant 0 : i32
    %2 = arith.cmpi ne, %1, %c0_i32_0 : i32
    scf.if %2 {
      %cst_13 = arith.constant 0.000000e+00 : f32
      %17 = vector.broadcast %cst_13 : f32 to vector<8x128xf32>
      %c0_14 = arith.constant 0 : index
      %c0_15 = arith.constant 0 : index
      %18 = vector.load %arg4[%c0_14, %c0_15] : memref<8x128xf32, #tpu.memory_space<vmem>>, vector<8x128xf32>
      tpu.vector_store %arg4[%c0_14, %c0_15], %17 {strides = array<i32>} : memref<8x128xf32, #tpu.memory_space<vmem>>, vector<8x128xf32>,
      %cst_16 = arith.constant 0.000000e+00 : f32
      %19 = vector.broadcast %cst_16 : f32 to vector<8x128xf32>
      %c0_17 = arith.constant 0 : index
      %c0_18 = arith.constant 0 : index
      %20 = vector.load %arg5[%c0_17, %c0_18] : memref<8x128xf32, #tpu.memory_space<vmem>>, vector<8x128xf32>
      tpu.vector_store %arg5[%c0_17, %c0_18], %19 {strides = array<i32>} : memref<8x128xf32, #tpu.memory_space<vmem>>, vector<8x128xf32>,
    } else {
    }
    %c0 = arith.constant 0 : index
    %c0_1 = arith.constant 0 : index
    %3 = vector.load %arg2[%c0, %c0_1] : memref<16x128xf32, #tpu.memory_space<vmem>>, vector<16x128xf32>
    %c0_2 = arith.constant 0 : index
    %c0_3 = arith.constant 0 : index
    %4 = vector.load %arg3[%c0_2, %c0_3] : memref<16x128xf32, #tpu.memory_space<vmem>>, vector<16x128xf32>
    %c0_4 = arith.constant 0 : index
    %c0_5 = arith.constant 0 : index
    %5 = vector.load %arg4[%c0_4, %c0_5] : memref<8x128xf32, #tpu.memory_space<vmem>>, vector<8x128xf32>
    %6 = arith.mulf %3, %4 : vector<16x128xf32>
    %7 = vector.shape_cast %6 : vector<16x128xf32> to vector<2x8x128xf32>
    %cst = arith.constant dense<0.000000e+00> : vector<8x128xf32>
    %8 = vector.multi_reduction <add>, %7, %cst [0] : vector<2x8x128xf32> to vector<8x128xf32>
    %9 = arith.addf %5, %8 : vector<8x128xf32>
    %c0_6 = arith.constant 0 : index
    %c0_7 = arith.constant 0 : index
    %10 = vector.load %arg4[%c0_6, %c0_7] : memref<8x128xf32, #tpu.memory_space<vmem>>, vector<8x128xf32>
    tpu.vector_store %arg4[%c0_6, %c0_7], %9 {strides = array<i32>} : memref<8x128xf32, #tpu.memory_space<vmem>>, vector<8x128xf32>,
    %c0_8 = arith.constant 0 : index
    %c0_9 = arith.constant 0 : index
    %11 = vector.load %arg5[%c0_8, %c0_9] : memref<8x128xf32, #tpu.memory_space<vmem>>, vector<8x128xf32>
    %12 = arith.addf %3, %4 : vector<16x128xf32>
    %13 = vector.shape_cast %12 : vector<16x128xf32> to vector<2x8x128xf32>
    %cst_10 = arith.constant dense<0.000000e+00> : vector<8x128xf32>
    %14 = vector.multi_reduction <add>, %13, %cst_10 [0] : vector<2x8x128xf32> to vector<8x128xf32>
    %15 = arith.addf %11, %14 : vector<8x128xf32>
    %c0_11 = arith.constant 0 : index
    %c0_12 = arith.constant 0 : index
    %16 = vector.load %arg5[%c0_11, %c0_12] : memref<8x128xf32, #tpu.memory_space<vmem>>, vector<8x128xf32>
    tpu.vector_store %arg5[%c0_11, %c0_12], %15 {strides = array<i32>} : memref<8x128xf32, #tpu.memory_space<vmem>>, vector<8x128xf32>,
    return
  }
  func.func @transform_0(%arg0: i32, %arg1: i32) -> (i32, i32) {
    %c1_i32 = arith.constant 1 : i32
    %0 = arith.muli %arg0, %c1_i32 : i32
    %1 = arith.addi %0, %arg1 : i32
    %c0_i32 = arith.constant 0 : i32
    %2 = arith.minsi %1, %c0_i32 : i32
    %c0_i32_0 = arith.constant 0 : i32
    %c0_i32_1 = arith.constant 0 : i32
    return %2, %c0_i32_0 : i32, i32
  }
  func.func @transform_1(%arg0: i32, %arg1: i32) -> (i32, i32) {
    %c1_i32 = arith.constant 1 : i32
    %0 = arith.muli %arg0, %c1_i32 : i32
    %1 = arith.addi %0, %arg1 : i32
    %c0_i32 = arith.constant 0 : i32
    %2 = arith.minsi %1, %c0_i32 : i32
    %c0_i32_0 = arith.constant 0 : i32
    %c0_i32_1 = arith.constant 0 : i32
    return %2, %c0_i32_0 : i32, i32
  }
  func.func @transform_2(%arg0: i32, %arg1: i32) -> (i32, i32) {
    %c0_i32 = arith.constant 0 : i32
    %c0_i32_0 = arith.constant 0 : i32
    return %arg0, %c0_i32 : i32, i32
  }
  func.func @transform_3(%arg0: i32, %arg1: i32) -> (i32, i32) {
    %c0_i32 = arith.constant 0 : i32
    %c0_i32_0 = arith.constant 0 : i32
    return %arg0, %c0_i32 : i32, i32
  }
}

</mosaic_0001>

<llo_original>
// kernel: tpu_custom_call.1
$region0: #{tpu_custom_call.1}
  #allocation0 [shape = 'u32[]', space=smem, size = 0x4, offset = 0x4, fixed_abs, tag = 'smem constant byte address 0x4 - core index']
  #allocation1 [shape = 'u32[72,128]{1,0:T(1,128)}', space=vmem, size = 0x9000, scoped, tag = 'internal scratch']
  %s0 = inlined_call_operand.hbm [shape: f32[16,128], index: 0, kind: input, shape index: {}]
  %s1 = inlined_call_operand.hbm [shape: f32[16,128], index: 1, kind: input, shape index: {}]
  %s2 = inlined_call_operand.hbm [shape: f32[8,128], index: 2, kind: output, shape index: {0}]
  %s3 = inlined_call_operand.hbm [shape: f32[8,128], index: 3, kind: output, shape index: {1}]
  %4 = xla_tuple %s2, %s3
  %s5 = sld [smem:[#allocation0]]
  $region38: #{tpu_custom_call.1} parent=0
    _
  %s7 = ssub.s32 1, %s5
  %s8 = scalar_select 0, %s7, %s5
  $region1: #{tpu_custom_call.1} parent=0
    #allocation2 [shape = 'u8[8192]{0}', space=vmem, size = 0x2000, scoped, tag = 'input window, operand 0, single buffered']
    #allocation3 [shape = 's32[1]{0}', space=sflag, size = 0x4, scoped, tag = 'scoped memory for tpu_custom_call.1']
    #allocation4 [shape = 's32[1]{0}', space=sflag, size = 0x4, scoped, tag = 'scoped memory for tpu_custom_call.1']
    #allocation5 [shape = 'u8[8192]{0}', space=vmem, size = 0x2000, scoped, tag = 'input window, operand 1, single buffered']
    #allocation6 [shape = 's32[1]{0}', space=sflag, size = 0x4, scoped, tag = 'scoped memory for tpu_custom_call.1']
    #allocation7 [shape = 'u8[4096]{0}', space=vmem, size = 0x1000, scoped, tag = 'output window, operand 0, single buffered']
    #allocation8 [shape = 'u8[4096]{0}', space=vmem, size = 0x1000, scoped, tag = 'output window, operand 1, single buffered']
    #allocation9 [shape = 's32[1]{0}', space=sflag, size = 0x4, scoped, tag = 'scoped memory for tpu_custom_call.1']
    %9 = vsyncpa [#allocation3], 0
    %10 = vsyncpa [#allocation6], 0
    %11 = vsyncpa [#allocation4], 0
    %12 = vsyncpa [#allocation9], 0
    // Predicated region
    $region2: #{tpu_custom_call.1} parent=1 // pred_check
      _
    $region3: #{tpu_custom_call.1} parent=1 // pred_check_branch
      %14 = sbr.rel (0) target = $region5
    $region4: #{tpu_custom_call.1} parent=1 // pred_region
      %s15 = sadd.s32 0, 0
      %p16 = scmp.lt.s32.totalorder %s15, 0
      %s17 = scalar_select %p16, %s15, 0
      %s18 = smul.u32 2, %s17
      %20 = vsyncadd [#allocation3], 0
      %s21 = smul.addr %s18, 8
      %s22 = scalar_lea.hbm %s0, %s21
      %s23 = sshll.u32 %s22, 4
      %s24 = int_to_ptr.hbm [resolvable:$true] %s23
      %s25 = sshll.u32 [#allocation2], 4
      %s26 = int_to_ptr.vmem [resolvable:$true] %s25
      %31 = dma.hbm_to_vmem [thread:$0]  %s24, 256, %s26, [#allocation3], 128, 128, 8
    $region5: #{tpu_custom_call.1} parent=1 // pred_fallthru
      _
    // Predicated region
    $region6: #{tpu_custom_call.1} parent=1 // pred_check
      _
    $region7: #{tpu_custom_call.1} parent=1 // pred_check_branch
      %33 = sbr.rel (0) target = $region9
    $region8: #{tpu_custom_call.1} parent=1 // pred_region
      %s34 = sadd.s32 0, 0
      %p35 = scmp.lt.s32.totalorder %s34, 0
      %s36 = scalar_select %p35, %s34, 0
      %s37 = smul.u32 2, %s36
      %39 = vsyncadd [#allocation6], 0
      %s40 = smul.addr %s37, 8
      %s41 = scalar_lea.hbm %s1, %s40
      %s42 = sshll.u32 %s41, 4
      %s43 = int_to_ptr.hbm [resolvable:$true] %s42
      %s44 = sshll.u32 [#allocation5], 4
      %s45 = int_to_ptr.vmem [resolvable:$true] %s44
      %50 = dma.hbm_to_vmem [thread:$0]  %s43, 256, %s45, [#allocation6], 128, 128, 8
    $region9: #{tpu_custom_call.1} parent=1 // pred_fallthru
      _
    // Predicated region
    $region10: #{tpu_custom_call.1} parent=1 // pred_check
      _
    $region11: #{tpu_custom_call.1} parent=1 // pred_check_branch
      %52 = sbr.rel (0) target = $region13
    $region12: #{tpu_custom_call.1} parent=1 // pred_region
      %54 = dma.done [#allocation3], 256
    $region13: #{tpu_custom_call.1} parent=1 // pred_fallthru
      _
    // Predicated region
    $region14: #{tpu_custom_call.1} parent=1 // pred_check
      _
    $region15: #{tpu_custom_call.1} parent=1 // pred_check_branch
      %56 = sbr.rel (0) target = $region17
    $region16: #{tpu_custom_call.1} parent=1 // pred_region
      %58 = dma.done [#allocation6], 256
    $region17: #{tpu_custom_call.1} parent=1 // pred_fallthru
      _
    %s59 = sadd.s32 0, 0
    %p60 = scmp.lt.s32.totalorder %s59, 0
    %s61 = scalar_select %p60, %s59, 0
    %s62 = smul.u32 2, %s61
    %s63 = sadd.s32 0, 0
    %p64 = scmp.lt.s32.totalorder %s63, 0
    %s65 = scalar_select %p64, %s63, 0
    %s66 = smul.u32 2, %s65
    %p67 = scmp.eq.s32.totalorder 0, 0
    // Predicated region
    $region18: #{tpu_custom_call.1} parent=1 // pred_check
      %p68 = pneg %p67
    $region19: #{tpu_custom_call.1} parent=1 // pred_check_branch
      %70 = sbr.rel (%p68) target = $region21
    $region20: #{tpu_custom_call.1} parent=1 // pred_region
      %71 = vst [vmem:[#allocation7] sm:$0xff] 0.0
      %72 = vst [vmem:[#allocation8] sm:$0xff] 0.0
    $region21: #{tpu_custom_call.1} parent=1 // pred_fallthru
      _
    %v73 = vld [vmem:[#allocation2] sm:$0xff]
    %v74 = vld [vmem:[#allocation2 + $0x8] sm:$0xff]
    %v75 = vld [vmem:[#allocation5] sm:$0xff]
    %v76 = vld [vmem:[#allocation5 + $0x8] sm:$0xff]
    %v77 = vld [vmem:[#allocation7] sm:$0xff]
    %v78 = vmul.f32 %v73, %v75
    %v79 = vmul.f32 %v74, %v76
    %v80 = vadd.f32 %v78, %v79
    %v81 = vadd.f32 %v77, %v80
    %82 = vst [vmem:[#allocation7] sm:$0xff] %v81
    %v83 = vld [vmem:[#allocation8] sm:$0xff]
    %v84 = vadd.f32 %v73, %v75
    %v85 = vadd.f32 %v74, %v76
    %v86 = vadd.f32 %v84, %v85
    %v87 = vadd.f32 %v83, %v86
    %88 = vst [vmem:[#allocation8] sm:$0xff] %v87
    // Predicated region
    $region22: #{tpu_custom_call.1} parent=1 // pred_check
      _
    $region23: #{tpu_custom_call.1} parent=1 // pred_check_branch
      %90 = sbr.rel (0) target = $region25
    $region24: #{tpu_custom_call.1} parent=1 // pred_region
      %92 = vsyncadd [#allocation4], 0
      %s94 = sshll.u32 [#allocation7], 4
      %s95 = int_to_ptr.vmem [resolvable:$true] %s94
      %s96 = sshll.u32 %s2, 4
      %s97 = int_to_ptr.hbm [resolvable:$true] %s96
      %99 = dma.vmem_to_hbm [thread:$0]  %s95, 128, %s97, [#allocation4]
    $region25: #{tpu_custom_call.1} parent=1 // pred_fallthru
      _
    // Predicated region
    $region26: #{tpu_custom_call.1} parent=1 // pred_check
      _
    $region27: #{tpu_custom_call.1} parent=1 // pred_check_branch
      %101 = sbr.rel (0) target = $region29
    $region28: #{tpu_custom_call.1} parent=1 // pred_region
      %103 = vsyncadd [#allocation9], 0
      %s105 = sshll.u32 [#allocation8], 4
      %s106 = int_to_ptr.vmem [resolvable:$true] %s105
      %s107 = sshll.u32 %s3, 4
      %s108 = int_to_ptr.hbm [resolvable:$true] %s107
      %110 = dma.vmem_to_hbm [thread:$0]  %s106, 128, %s108, [#allocation9]
    $region29: #{tpu_custom_call.1} parent=1 // pred_fallthru
      _
    // Predicated region
    $region30: #{tpu_custom_call.1} parent=1 // pred_check
      _
    $region31: #{tpu_custom_call.1} parent=1 // pred_check_branch
      %112 = sbr.rel (0) target = $region33
    $region32: #{tpu_custom_call.1} parent=1 // pred_region
      %114 = dma.done [#allocation4], 128
    $region33: #{tpu_custom_call.1} parent=1 // pred_fallthru
      _
    // Predicated region
    $region34: #{tpu_custom_call.1} parent=1 // pred_check
      _
    $region35: #{tpu_custom_call.1} parent=1 // pred_check_branch
      %116 = sbr.rel (0) target = $region37
    $region36: #{tpu_custom_call.1} parent=1 // pred_region
      %118 = dma.done [#allocation9], 128
    $region37: #{tpu_custom_call.1} parent=1 // pred_fallthru
      _
    %119 = vsyncpa [#allocation3], 1
    %120 = vsyncpa [#allocation6], 1
    %121 = vsyncpa [#allocation4], 1
    %122 = vsyncpa [#allocation9], 1

</llo_original>
